<compile_context>
chip_gen: v7x
topology: tpu7x:2x2x1
jax: 0.10.0
libtpu: 0.0.40
codegen_flags: <defaults>
</compile_context>

<pallas_src>
import functools

import jax
import jax.numpy as jnp
from jax import lax
from jax.experimental import pallas as pl
from jax.experimental.pallas import tpu as pltpu


# ---------------------------------------------------------------------------
# Fused encoder + decoder kernel (one grid step = one tile of whole graphs)
# ---------------------------------------------------------------------------
def _cgvae_kernel(x_ref, ec_ref, w1_ref, wml_ref, wd_ref, wh_ref, bias_ref,
                  out_ref, *, num_nodes, latent, cond_dim, hidden,
                  node_types, edge_dim):
    N, H, L = num_nodes, hidden, latent
    E = edge_dim

    # Fused bias slab: [b1 (H) | bmu|blv (2L) | bd (H) | be|bn (N*(E+T))]
    bias = bias_ref[...]
    b1 = bias[:, 0:H]
    bml = bias[:, H:H + 2 * L]
    bd = bias[:, H + 2 * L:2 * H + 2 * L]
    bh = bias[:, 2 * H + 2 * L:]

    # ----- encoder: per-node MLP (bf16 x bf16 -> f32 accumulate on MXU) -----
    h = jnp.dot(x_ref[...], w1_ref[...],
                preferred_element_type=jnp.float32) + b1
    h = jnp.maximum(h, 0.0)                                    # [TB*N, H]

    # ----- graph mean pool: per-graph sublane reduce (no pooling matrix) ----
    # Rows of each graph are contiguous (wrapper guarantees this ordering).
    tb = h.shape[0] // N
    g = jnp.sum(h.reshape(tb, N, H), axis=1) * (1.0 / N)       # [TB, H]

    # ----- fused (mu | logvar) head -----------------------------------------
    mulv = jnp.dot(g.astype(wml_ref.dtype), wml_ref[...],
                   preferred_element_type=jnp.float32) + bml   # [TB, 2L]
    # TODO(synk): pad L to a multiple of 128 at production sizes so this lane
    # split is vreg-aligned (fine at demo shapes).
    mu = mulv[:, :L]
    lv = mulv[:, L:]

    ec = ec_ref[...]                                           # [TB, L+C]
    eps = ec[:, :L]
    cond = ec[:, L:]
    z = mu + eps * jnp.exp(0.5 * lv)                           # reparameterize

    # ----- decoder: concat(z, condition) @ Wd -------------------------------
    zc = jnp.concatenate([z, cond], axis=1).astype(wd_ref.dtype)   # [TB, L+C]
    hd = jnp.dot(zc, wd_ref[...], preferred_element_type=jnp.float32) + bd
    hd = jnp.maximum(hd, 0.0)                                  # [TB, H]

    # ----- fused (edge-emb | node-logit) head (edge first: split at N*E) ----
    heads = jnp.dot(hd.astype(wh_ref.dtype), wh_ref[...],
                    preferred_element_type=jnp.float32) + bh   # [TB, N*E + N*T]
    ne = N * E
    node_flat = heads[:, ne:]                                  # [TB, N*T]

    # TODO(synk): pad E to a multiple of 128 at production sizes so this
    # reshape is a pure tiling reinterpretation rather than a relayout.
    e = heads[:, :ne].reshape(tb, N, E).astype(jnp.bfloat16)   # [TB, N, E]
    edge = lax.dot_general(
        e, e,
        dimension_numbers=(((2,), (2,)), ((0,), (0,))),
        preferred_element_type=jnp.float32)                    # [TB, N, N]
    edge_flat = edge.reshape(tb, N * N)                        # [TB, N*N]

    # Single lane-dense output slab: [node | edge | mu|logvar]
    out_ref[...] = jnp.concatenate([node_flat, edge_flat, mulv], axis=1)


# ---------------------------------------------------------------------------
# Wrapper
# ---------------------------------------------------------------------------
def conditional_graph_vae_forward(data, condition, eps, params, *,
                                  num_nodes, node_types, edge_dim,
                                  graphs_per_tile=1):
    """Runs the CGVAE forward pass. Returns (node_logits, edge_logits, mu, logvar)."""
    B, N, F = data.shape
    assert N == num_nodes
    L = params["wmu"].shape[1]
    C = condition.shape[1]
    H = params["w1"].shape[1]
    T, E = node_types, edge_dim

    TB = max(1, min(graphs_per_tile, B))
    assert B % TB == 0, "graphs_per_tile must divide batch"
    G = B // TB

    # Wrapper-side layout plumbing (free XLA reshapes / concats).
    # NOTE: pooling in-kernel relies on each graph's N rows being contiguous,
    # which this reshape guarantees.
    x3 = data.reshape(G, TB * N, F).astype(jnp.bfloat16)               # [G, TB*N, F]
    ec = jnp.concatenate([eps, condition], axis=1).astype(jnp.float32)
    ec = ec.reshape(G, TB, L + C)                                      # [G, TB, L+C]

    w1 = params["w1"].astype(jnp.bfloat16)                             # [F, H]
    wml = jnp.concatenate([params["wmu"], params["wlv"]],
                          axis=1).astype(jnp.bfloat16)                 # [H, 2L]
    wd = params["wd"].astype(jnp.bfloat16)                             # [L+C, H]
    # Edge head first so the node/edge split is lane-aligned (N*E = 128 here).
    wh = jnp.concatenate([params["we"], params["wn"]],
                         axis=1).astype(jnp.bfloat16)                  # [H, N*(E+T)]
    bias = jnp.concatenate(
        [params["b1"],
         jnp.concatenate([params["bmu"], params["blv"]], axis=1),
         params["bd"],
         jnp.concatenate([params["be"], params["bn"]], axis=1)],
        axis=1).astype(jnp.float32)                                    # [1, 2H+2L+N*(E+T)]

    out_w = N * T + N * N + 2 * L

    kernel = functools.partial(_cgvae_kernel, num_nodes=N, latent=L,
                               cond_dim=C, hidden=H, node_types=T, edge_dim=E)

    out = pl.pallas_call(
        kernel,
        grid=(G,),
        in_specs=[
            pl.BlockSpec((None, TB * N, F), lambda i: (i, 0, 0)),   # x tile
            pl.BlockSpec((None, TB, L + C), lambda i: (i, 0, 0)),   # eps|cond tile
            pl.BlockSpec(w1.shape, lambda i: (0, 0)),               # resident weights
            pl.BlockSpec(wml.shape, lambda i: (0, 0)),
            pl.BlockSpec(wd.shape, lambda i: (0, 0)),
            pl.BlockSpec(wh.shape, lambda i: (0, 0)),
            pl.BlockSpec(bias.shape, lambda i: (0, 0)),
        ],
        out_specs=pl.BlockSpec((None, TB, out_w), lambda i: (i, 0, 0)),
        out_shape=jax.ShapeDtypeStruct((G, TB, out_w), jnp.float32),
        compiler_params=pltpu.CompilerParams(
            dimension_semantics=("parallel",),        # shard across TCs on v7x
            vmem_limit_bytes=32 * 1024 * 1024),       # portable v5e/v6e/v7x budget
    )(x3, ec, w1, wml, wd, wh, bias)

    out2 = out.reshape(B, out_w)
    node_logits = out2[:, :N * T].reshape(B, N, T)
    edge_logits = out2[:, N * T:N * T + N * N].reshape(B, N, N)
    mulv = out2[:, N * T + N * N:]
    mu, logvar = mulv[:, :L], mulv[:, L:]
    return node_logits, edge_logits, mu, logvar


# ---------------------------------------------------------------------------
# Pure-JAX reference (f32) for a parity check
# ---------------------------------------------------------------------------
def _reference_forward(data, condition, eps, params, *, num_nodes, node_types,
                       edge_dim):
    B, N, F = data.shape
    L = params["wmu"].shape[1]
    h = jnp.maximum(data.reshape(B * N, F) @ params["w1"] + params["b1"], 0.0)
    g = h.reshape(B, N, -1).mean(axis=1)
    mu = g @ params["wmu"] + params["bmu"]
    lv = g @ params["wlv"] + params["blv"]
    z = mu + eps * jnp.exp(0.5 * lv)
    zc = jnp.concatenate([z, condition], axis=1)
    hd = jnp.maximum(zc @ params["wd"] + params["bd"], 0.0)
    node = (hd @ params["wn"] + params["bn"]).reshape(B, num_nodes, node_types)
    e = (hd @ params["we"] + params["be"]).reshape(B, num_nodes, edge_dim)
    edge = jnp.einsum("bie,bje->bij", e, e)
    return node, edge, mu, lv


def init_params(key, *, feat, hidden, latent, cond, num_nodes, node_types,
                edge_dim):
    """Deterministic synthetic parameter init (uniform +-1/sqrt(fan_in))."""
    def dense(k, fan_in, fan_out):
        bound = 1.0 / jnp.sqrt(jnp.asarray(fan_in, jnp.float32))
        kw, kb = jax.random.split(k)
        w = jax.random.uniform(kw, (fan_in, fan_out), jnp.float32, -bound, bound)
        b = jax.random.uniform(kb, (1, fan_out), jnp.float32, -bound, bound)
        return w, b

    ks = jax.random.split(key, 6)
    w1, b1 = dense(ks[0], feat, hidden)
    wmu, bmu = dense(ks[1], hidden, latent)
    wlv, blv = dense(ks[2], hidden, latent)
    wd, bd = dense(ks[3], latent + cond, hidden)     # decoder layer on concat(z, c)
    wn, bn = dense(ks[4], hidden, num_nodes * node_types)
    we, be = dense(ks[5], hidden, num_nodes * edge_dim)
    return dict(w1=w1, b1=b1, wmu=wmu, bmu=bmu, wlv=wlv, blv=blv,
                wd=wd, bd=bd, wn=wn, bn=bn, we=we, be=be)


if __name__ == "__main__":
    # Small shapes consistent with the module's forward.
    B, N, F = 2, 8, 16          # batch, nodes per graph, node feature dim
    H, L, C = 32, 16, 8         # hidden, latent, condition dims
    T, E = 4, 16                # node-type classes, edge embedding dim

    root = jax.random.PRNGKey(0)
    k_x, k_c, k_eps, k_p = jax.random.split(root, 4)

    data = jax.random.normal(k_x, (B, N, F), jnp.float32)
    condition = jax.random.normal(k_c, (B, C), jnp.float32)
    eps = jax.random.normal(k_eps, (B, L), jnp.float32)   # reparam noise
    params = init_params(k_p, feat=F, hidden=H, latent=L, cond=C,
                         num_nodes=N, node_types=T, edge_dim=E)

    node_logits, edge_logits, mu, logvar = conditional_graph_vae_forward(
        data, condition, eps, params,
        num_nodes=N, node_types=T, edge_dim=E, graphs_per_tile=1)
    jax.block_until_ready((node_logits, edge_logits, mu, logvar))

    assert node_logits.shape == (B, N, T)
    assert edge_logits.shape == (B, N, N)
    assert mu.shape == (B, L) and logvar.shape == (B, L)

    # Loose parity vs. f32 reference (kernel GEMMs run in bf16).
    rn, re, rmu, rlv = _reference_forward(
        data, condition, eps, params, num_nodes=N, node_types=T, edge_dim=E)
    assert bool(jnp.allclose(node_logits, rn, rtol=1e-1, atol=1e-1))
    assert bool(jnp.allclose(edge_logits, re, rtol=1e-1, atol=1e-1))
    assert bool(jnp.allclose(mu, rmu, rtol=1e-1, atol=1e-1))
    assert bool(jnp.allclose(logvar, rlv, rtol=1e-1, atol=1e-1))

    print("KERNEL_OK")
</pallas_src>

<mosaic_0001>
module attributes {stable_mosaic.version = 11 : i64} {
  func.func @_cgvae_kernel(%arg0: i32, %arg1: memref<1x8x16xbf16, #tpu.memory_space<vmem>>, %arg2: memref<1x1x24xf32, #tpu.memory_space<vmem>>, %arg3: memref<16x32xbf16, #tpu.memory_space<vmem>>, %arg4: memref<32x32xbf16, #tpu.memory_space<vmem>>, %arg5: memref<24x32xbf16, #tpu.memory_space<vmem>>, %arg6: memref<32x160xbf16, #tpu.memory_space<vmem>>, %arg7: memref<1x256xf32, #tpu.memory_space<vmem>>, %arg8: memref<1x1x128xf32, #tpu.memory_space<vmem>>) attributes {dimension_semantics = [#tpu.dimension_semantics<parallel>], iteration_bounds = array<i64: 2>, scalar_prefetch = 0 : i64, scratch_operands = 0 : i64, tpu.core_type = #tpu.core_type<tc>, window_params = [{transform_indices = @transform_0, window_bounds = array<i64: 1, 8, 16>}, {transform_indices = @transform_1, window_bounds = array<i64: 1, 1, 24>}, {pipeline_mode = #tpu.pipeline_mode<synchronous>, transform_indices = @transform_2, window_bounds = array<i64: 16, 32>}, {pipeline_mode = #tpu.pipeline_mode<synchronous>, transform_indices = @transform_3, window_bounds = array<i64: 32, 32>}, {pipeline_mode = #tpu.pipeline_mode<synchronous>, transform_indices = @transform_4, window_bounds = array<i64: 24, 32>}, {pipeline_mode = #tpu.pipeline_mode<synchronous>, transform_indices = @transform_5, window_bounds = array<i64: 32, 160>}, {pipeline_mode = #tpu.pipeline_mode<synchronous>, transform_indices = @transform_6, window_bounds = array<i64: 1, 256>}, {transform_indices = @transform_7, window_bounds = array<i64: 1, 1, 128>}]} {
    %c0 = arith.constant 0 : index
    %c0_0 = arith.constant 0 : index
    %0 = vector.load %arg7[%c0, %c0_0] : memref<1x256xf32, #tpu.memory_space<vmem>>, vector<1x256xf32>
    %1 = vector.extract_strided_slice %0 {offsets = [0, 0], sizes = [1, 32], strides = [1, 1]} : vector<1x256xf32> to vector<1x32xf32>
    %2 = vector.extract_strided_slice %0 {offsets = [0, 32], sizes = [1, 32], strides = [1, 1]} : vector<1x256xf32> to vector<1x32xf32>
    %3 = vector.extract_strided_slice %0 {offsets = [0, 64], sizes = [1, 32], strides = [1, 1]} : vector<1x256xf32> to vector<1x32xf32>
    %4 = vector.extract_strided_slice %0 {offsets = [0, 96], sizes = [1, 160], strides = [1, 1]} : vector<1x256xf32> to vector<1x160xf32>
    %c0_1 = arith.constant 0 : index
    %c0_2 = arith.constant 0 : index
    %c0_3 = arith.constant 0 : index
    %5 = vector.load %arg1[%c0_1, %c0_2, %c0_3] : memref<1x8x16xbf16, #tpu.memory_space<vmem>>, vector<1x8x16xbf16>
    %6 = vector.shape_cast %5 : vector<1x8x16xbf16> to vector<8x16xbf16>
    %c0_4 = arith.constant 0 : index
    %c0_5 = arith.constant 0 : index
    %7 = vector.load %arg3[%c0_4, %c0_5] : memref<16x32xbf16, #tpu.memory_space<vmem>>, vector<16x32xbf16>
    %cst = arith.constant dense<0.000000e+00> : vector<8x32xf32>
    %8 = tpu.matmul %6, %7, %cst {dimension_numbers = #tpu.dot_dimension_numbers<[1], [0], [0], [1], [0, 0, 1, 1], [], []>} : vector<8x16xbf16>, vector<16x32xbf16>, vector<8x32xf32> -> vector<8x32xf32>
    %9 = vector.broadcast %1 : vector<1x32xf32> to vector<8x32xf32>
    %10 = arith.addf %8, %9 : vector<8x32xf32>
    %cst_6 = arith.constant 0.000000e+00 : f32
    %11 = vector.broadcast %cst_6 : f32 to vector<8x32xf32>
    %12 = arith.maximumf %10, %11 : vector<8x32xf32>
    %13 = vector.shape_cast %12 : vector<8x32xf32> to vector<1x8x32xf32>
    %cst_7 = arith.constant dense<0.000000e+00> : vector<1x32xf32>
    %14 = vector.multi_reduction <add>, %13, %cst_7 [1] : vector<1x8x32xf32> to vector<1x32xf32>
    %cst_8 = arith.constant 1.250000e-01 : f32
    %15 = vector.broadcast %cst_8 : f32 to vector<1x32xf32>
    %16 = arith.mulf %14, %15 : vector<1x32xf32>
    %17 = arith.truncf %16 : vector<1x32xf32> to vector<1x32xbf16>
    %c0_9 = arith.constant 0 : index
    %c0_10 = arith.constant 0 : index
    %18 = vector.load %arg4[%c0_9, %c0_10] : memref<32x32xbf16, #tpu.memory_space<vmem>>, vector<32x32xbf16>
    %cst_11 = arith.constant dense<0.000000e+00> : vector<1x32xf32>
    %19 = tpu.matmul %17, %18, %cst_11 {dimension_numbers = #tpu.dot_dimension_numbers<[1], [0], [0], [1], [0, 0, 1, 1], [], []>} : vector<1x32xbf16>, vector<32x32xbf16>, vector<1x32xf32> -> vector<1x32xf32>
    %20 = arith.addf %19, %2 : vector<1x32xf32>
    %21 = vector.extract_strided_slice %20 {offsets = [0, 0], sizes = [1, 16], strides = [1, 1]} : vector<1x32xf32> to vector<1x16xf32>
    %22 = vector.extract_strided_slice %20 {offsets = [0, 16], sizes = [1, 16], strides = [1, 1]} : vector<1x32xf32> to vector<1x16xf32>
    %c0_12 = arith.constant 0 : index
    %c0_13 = arith.constant 0 : index
    %c0_14 = arith.constant 0 : index
    %23 = vector.load %arg2[%c0_12, %c0_13, %c0_14] : memref<1x1x24xf32, #tpu.memory_space<vmem>>, vector<1x1x24xf32>
    %24 = vector.shape_cast %23 : vector<1x1x24xf32> to vector<1x24xf32>
    %25 = vector.extract_strided_slice %24 {offsets = [0, 0], sizes = [1, 16], strides = [1, 1]} : vector<1x24xf32> to vector<1x16xf32>
    %26 = vector.extract_strided_slice %24 {offsets = [0, 16], sizes = [1, 8], strides = [1, 1]} : vector<1x24xf32> to vector<1x8xf32>
    %cst_15 = arith.constant 5.000000e-01 : f32
    %27 = vector.broadcast %cst_15 : f32 to vector<1x16xf32>
    %28 = arith.mulf %27, %22 : vector<1x16xf32>
    %29 = math.exp %28 : vector<1x16xf32>
    %30 = arith.mulf %25, %29 : vector<1x16xf32>
    %31 = arith.addf %21, %30 : vector<1x16xf32>
    %32 = tpu.concatenate %31, %26 in 1 : vector<1x16xf32>, vector<1x8xf32> -> vector<1x24xf32>
    %33 = arith.truncf %32 : vector<1x24xf32> to vector<1x24xbf16>
    %c0_16 = arith.constant 0 : index
    %c0_17 = arith.constant 0 : index
    %34 = vector.load %arg5[%c0_16, %c0_17] : memref<24x32xbf16, #tpu.memory_space<vmem>>, vector<24x32xbf16>
    %cst_18 = arith.constant dense<0.000000e+00> : vector<1x32xf32>
    %35 = tpu.matmul %33, %34, %cst_18 {dimension_numbers = #tpu.dot_dimension_numbers<[1], [0], [0], [1], [0, 0, 1, 1], [], []>} : vector<1x24xbf16>, vector<24x32xbf16>, vector<1x32xf32> -> vector<1x32xf32>
    %36 = arith.addf %35, %3 : vector<1x32xf32>
    %cst_19 = arith.constant 0.000000e+00 : f32
    %37 = vector.broadcast %cst_19 : f32 to vector<1x32xf32>
    %38 = arith.maximumf %36, %37 : vector<1x32xf32>
    %39 = arith.truncf %38 : vector<1x32xf32> to vector<1x32xbf16>
    %c0_20 = arith.constant 0 : index
    %c0_21 = arith.constant 0 : index
    %40 = vector.load %arg6[%c0_20, %c0_21] : memref<32x160xbf16, #tpu.memory_space<vmem>>, vector<32x160xbf16>
    %cst_22 = arith.constant dense<0.000000e+00> : vector<1x160xf32>
    %41 = tpu.matmul %39, %40, %cst_22 {dimension_numbers = #tpu.dot_dimension_numbers<[1], [0], [0], [1], [0, 0, 1, 1], [], []>} : vector<1x32xbf16>, vector<32x160xbf16>, vector<1x160xf32> -> vector<1x160xf32>
    %42 = arith.addf %41, %4 : vector<1x160xf32>
    %43 = vector.extract_strided_slice %42 {offsets = [0, 128], sizes = [1, 32], strides = [1, 1]} : vector<1x160xf32> to vector<1x32xf32>
    %44 = vector.extract_strided_slice %42 {offsets = [0, 0], sizes = [1, 128], strides = [1, 1]} : vector<1x160xf32> to vector<1x128xf32>
    %45 = vector.shape_cast %44 : vector<1x128xf32> to vector<1x8x16xf32>
    %46 = arith.truncf %45 : vector<1x8x16xf32> to vector<1x8x16xbf16>
    %cst_23 = arith.constant dense<0.000000e+00> : vector<1x8x8xf32>
    %47 = tpu.matmul %46, %46, %cst_23 {dimension_numbers = #tpu.dot_dimension_numbers<[2], [2], [1], [1], [0, 0, 0, 1, 1, 1], [0], [0]>} : vector<1x8x16xbf16>, vector<1x8x16xbf16>, vector<1x8x8xf32> -> vector<1x8x8xf32>
    %48 = vector.shape_cast %47 : vector<1x8x8xf32> to vector<1x64xf32>
    %49 = tpu.concatenate %43, %48, %20 in 1 : vector<1x32xf32>, vector<1x64xf32>, vector<1x32xf32> -> vector<1x128xf32>
    %c0_24 = arith.constant 0 : index
    %c0_25 = arith.constant 0 : index
    %c0_26 = arith.constant 0 : index
    %50 = vector.load %arg8[%c0_24, %c0_25, %c0_26] : memref<1x1x128xf32, #tpu.memory_space<vmem>>, vector<1x1x128xf32>
    %51 = vector.shape_cast %50 : vector<1x1x128xf32> to vector<1x128xf32>
    %52 = vector.shape_cast %49 : vector<1x128xf32> to vector<1x1x128xf32>
    tpu.vector_store %arg8[%c0_24, %c0_25, %c0_26], %52 {strides = array<i32>} : memref<1x1x128xf32, #tpu.memory_space<vmem>>, vector<1x1x128xf32>,
    return
  }
  func.func @transform_0(%arg0: i32) -> (i32, i32, i32) {
    %c0_i32 = arith.constant 0 : i32
    %c0_i32_0 = arith.constant 0 : i32
    %c0_i32_1 = arith.constant 0 : i32
    return %arg0, %c0_i32, %c0_i32_0 : i32, i32, i32
  }
  func.func @transform_1(%arg0: i32) -> (i32, i32, i32) {
    %c0_i32 = arith.constant 0 : i32
    %c0_i32_0 = arith.constant 0 : i32
    %c0_i32_1 = arith.constant 0 : i32
    return %arg0, %c0_i32, %c0_i32_0 : i32, i32, i32
  }
  func.func @transform_2(%arg0: i32) -> (i32, i32) {
    %c0_i32 = arith.constant 0 : i32
    %c0_i32_0 = arith.constant 0 : i32
    %c0_i32_1 = arith.constant 0 : i32
    return %c0_i32, %c0_i32_0 : i32, i32
  }
  func.func @transform_3(%arg0: i32) -> (i32, i32) {
    %c0_i32 = arith.constant 0 : i32
    %c0_i32_0 = arith.constant 0 : i32
    %c0_i32_1 = arith.constant 0 : i32
    return %c0_i32, %c0_i32_0 : i32, i32
  }
  func.func @transform_4(%arg0: i32) -> (i32, i32) {
    %c0_i32 = arith.constant 0 : i32
    %c0_i32_0 = arith.constant 0 : i32
    %c0_i32_1 = arith.constant 0 : i32
    return %c0_i32, %c0_i32_0 : i32, i32
  }
  func.func @transform_5(%arg0: i32) -> (i32, i32) {
    %c0_i32 = arith.constant 0 : i32
    %c0_i32_0 = arith.constant 0 : i32
    %c0_i32_1 = arith.constant 0 : i32
    return %c0_i32, %c0_i32_0 : i32, i32
  }
  func.func @transform_6(%arg0: i32) -> (i32, i32) {
    %c0_i32 = arith.constant 0 : i32
    %c0_i32_0 = arith.constant 0 : i32
    %c0_i32_1 = arith.constant 0 : i32
    return %c0_i32, %c0_i32_0 : i32, i32
  }
  func.func @transform_7(%arg0: i32) -> (i32, i32, i32) {
    %c0_i32 = arith.constant 0 : i32
    %c0_i32_0 = arith.constant 0 : i32
    %c0_i32_1 = arith.constant 0 : i32
    return %arg0, %c0_i32, %c0_i32_0 : i32, i32, i32
  }
}

</mosaic_0001>

<llo_original>
// kernel: tpu_custom_call.1
$region0: #{tpu_custom_call.1}
  #allocation0 [shape = 'u32[]', space=smem, size = 0x4, offset = 0x4, fixed_abs, tag = 'smem constant byte address 0x4 - core index']
  #allocation1 [shape = 'u32[144,128]{1,0:T(1,128)}', space=vmem, size = 0x12000, scoped, tag = 'internal scratch']
  %s0 = inlined_call_operand.hbm [shape: bf16[2,8,16], index: 0, kind: input, shape index: {}]
  %s1 = inlined_call_operand.vmem [shape: f32[2,1,24], index: 1, kind: input, shape index: {}]
  %s2 = inlined_call_operand.hbm [shape: bf16[16,32], index: 2, kind: input, shape index: {}]
  %s3 = inlined_call_operand.hbm [shape: bf16[32,32], index: 3, kind: input, shape index: {}]
  %s4 = inlined_call_operand.vmem [shape: bf16[24,32], index: 4, kind: input, shape index: {}]
  %s5 = inlined_call_operand.hbm [shape: bf16[32,160], index: 5, kind: input, shape index: {}]
  %s6 = inlined_call_operand.vmem [shape: f32[1,256], index: 6, kind: input, shape index: {}]
  %s7 = inlined_call_operand.hbm [shape: f32[2,1,128], index: 7, kind: output, shape index: {}]
  %s8 = sld [smem:[#allocation0]]
  $region77: #{tpu_custom_call.1} parent=0
    _
  %s10 = ssub.s32 1, %s8
  %s11 = scalar_select 0, %s10, %s8
  $region1: #{tpu_custom_call.1} parent=0
    #allocation2 [shape = 'u8[4096]{0}', space=vmem, size = 0x1000, scoped, tag = 'input window, operand 0']
    #allocation3 [shape = 's32[2]{0}', space=sflag, size = 0x8, scoped, tag = 'scoped memory for tpu_custom_call.1']
    #allocation4 [shape = 's32[2]{0}', space=sflag, size = 0x8, scoped, tag = 'scoped memory for tpu_custom_call.1']
    #allocation5 [shape = 'u8[4096]{0}', space=vmem, size = 0x1000, scoped, tag = 'input window, operand 2, single buffered']
    #allocation6 [shape = 's32[1]{0}', space=sflag, size = 0x4, scoped, tag = 'scoped memory for tpu_custom_call.1']
    #allocation7 [shape = 'u8[8192]{0}', space=vmem, size = 0x2000, scoped, tag = 'input window, operand 3, single buffered']
    #allocation8 [shape = 'u8[16384]{0}', space=vmem, size = 0x4000, scoped, tag = 'input window, operand 5, single buffered']
    #allocation9 [shape = 's32[1]{0}', space=sflag, size = 0x4, scoped, tag = 'scoped memory for tpu_custom_call.1']
    #allocation10 [shape = 'u8[1024]{0}', space=vmem, size = 0x400, scoped, tag = 'output window, operand 0']
    %12 = vsyncpa [#allocation3], 0
    %s13 = scalar_lea.sflag [#allocation3], 1
    %14 = vsyncpa %s13, 0
    %15 = vsyncpa [#allocation6], 0
    %16 = vsyncpa [#allocation9], 0
    %17 = vsyncpa [#allocation4], 0
    %s18 = scalar_lea.sflag [#allocation4], 1
    %19 = vsyncpa %s18, 0
    loop: start=0, step=1, limit=4
    $region2: #{tpu_custom_call.1} parent=1 // loop_pre_header
      _
    $region3: #{tpu_custom_call.1} parent=1 // loop_header
      %s21 = sphi 0, %s25
      %p22 = scmp.ge.s32.totalorder %s21, 4
      %s31 = sphi 0, %s33
      %s34 = sphi 0, %s31
      %s35 = sphi 0, %s34
      %s51 = sphi 0, %s35
      %s57 = sphi 0, %s59
      %s60 = sphi 0, %s57
      %s61 = sphi 0, %s60
      %s77 = sphi 0, %s61
      %s81 = sphi 0, %s81
      %s83 = sphi 0, %s81
      %s84 = sphi 0, %s83
      %s98 = sphi 0, %s84
      %s102 = sphi 0, %s102
      %s104 = sphi 0, %s102
      %s105 = sphi 0, %s104
      %s119 = sphi 0, %s105
      %s123 = sphi 0, %s123
      %s125 = sphi 0, %s123
      %s126 = sphi 0, %s125
      %s140 = sphi 0, %s126
      %s144 = sphi 0, %s144
      %s146 = sphi 0, %s144
      %s147 = sphi 0, %s146
      %s161 = sphi 0, %s147
      %s165 = sphi 0, %s165
      %s167 = sphi 0, %s165
      %s168 = sphi 0, %s167
      %s182 = sphi 0, %s168
      %s188 = sphi 0, %s190
      %s191 = sphi 0, %s188
      %s192 = sphi 0, %s191
      %s208 = sphi 0, %s192
    $region4: #{tpu_custom_call.1} parent=1 // loop_header_branch
      %24 = sbr.rel (%p22) target = $region8
    $region5: #{tpu_custom_call.1} parent=1 // loop_body
      %s26 = ssub.s32 %s21, 1
      %s27 = ssub.s32 %s21, 2
      %s28 = sadd.s32 %s21, 1
      %s29 = ssub.s32 %s21, %s28
      %p30 = scmp.eq.s32.totalorder %s29, 0
      %s32 = sadd.s32 %s31, 1
      %s33 = scalar_select %p30, %s31, %s32
      %p36 = pneg %p30
      %p37 = scmp.eq.s32.totalorder %s21, 1
      %p38 = por %p36, %p37
      %p39 = scmp.ne.s32.totalorder %s31, %s34
      %p40 = scmp.eq.s32.totalorder %s21, 0
      %p41 = por %p39, %p40
      %p42 = scmp.ne.s32.totalorder %s31, %s34
      %p43 = scmp.eq.s32.totalorder %s26, 1
      %p44 = por %p42, %p43
      %p45 = scmp.ne.s32.totalorder %s34, %s35
      %p46 = scmp.eq.s32.totalorder %s26, 0
      %p47 = por %p45, %p46
      %p48 = scmp.ne.s32.totalorder %s34, %s35
      %p49 = scmp.eq.s32.totalorder %s27, 1
      %p50 = por %p48, %p49
      %p52 = scmp.ne.s32.totalorder %s35, %s51
      %p53 = scmp.eq.s32.totalorder %s27, 0
      %p54 = por %p52, %p53
      %s55 = ssub.s32 %s21, %s28
      %p56 = scmp.eq.s32.totalorder %s55, 0
      %s58 = sadd.s32 %s57, 1
      %s59 = scalar_select %p56, %s57, %s58
      %p62 = pneg %p56
      %p63 = scmp.eq.s32.totalorder %s21, 1
      %p64 = por %p62, %p63
      %p65 = scmp.ne.s32.totalorder %s57, %s60
      %p66 = scmp.eq.s32.totalorder %s21, 0
      %p67 = por %p65, %p66
      %p68 = scmp.ne.s32.totalorder %s57, %s60
      %p69 = scmp.eq.s32.totalorder %s26, 1
      %p70 = por %p68, %p69
      %p71 = scmp.ne.s32.totalorder %s60, %s61
      %p72 = scmp.eq.s32.totalorder %s26, 0
      %p73 = por %p71, %p72
      %p74 = scmp.ne.s32.totalorder %s60, %s61
      %p75 = scmp.eq.s32.totalorder %s27, 1
      %p76 = por %p74, %p75
      %p78 = scmp.ne.s32.totalorder %s61, %s77
      %p79 = scmp.eq.s32.totalorder %s27, 0
      %p80 = por %p78, %p79
      %s82 = sadd.s32 %s81, 1
      %p85 = scmp.eq.s32.totalorder %s21, 1
      %p86 = scmp.ne.s32.totalorder %s81, %s83
      %p87 = scmp.eq.s32.totalorder %s21, 0
      %p88 = por %p86, %p87
      %p89 = scmp.ne.s32.totalorder %s81, %s83
      %p90 = scmp.eq.s32.totalorder %s26, 1
      %p91 = por %p89, %p90
      %p92 = scmp.ne.s32.totalorder %s83, %s84
      %p93 = scmp.eq.s32.totalorder %s26, 0
      %p94 = por %p92, %p93
      %p95 = scmp.ne.s32.totalorder %s83, %s84
      %p96 = scmp.eq.s32.totalorder %s27, 1
      %p97 = por %p95, %p96
      %p99 = scmp.ne.s32.totalorder %s84, %s98
      %p100 = scmp.eq.s32.totalorder %s27, 0
      %p101 = por %p99, %p100
      %s103 = sadd.s32 %s102, 1
      %p106 = scmp.eq.s32.totalorder %s21, 1
      %p107 = scmp.ne.s32.totalorder %s102, %s104
      %p108 = scmp.eq.s32.totalorder %s21, 0
      %p109 = por %p107, %p108
      %p110 = scmp.ne.s32.totalorder %s102, %s104
      %p111 = scmp.eq.s32.totalorder %s26, 1
      %p112 = por %p110, %p111
      %p113 = scmp.ne.s32.totalorder %s104, %s105
      %p114 = scmp.eq.s32.totalorder %s26, 0
      %p115 = por %p113, %p114
      %p116 = scmp.ne.s32.totalorder %s104, %s105
      %p117 = scmp.eq.s32.totalorder %s27, 1
      %p118 = por %p116, %p117
      %p120 = scmp.ne.s32.totalorder %s105, %s119
      %p121 = scmp.eq.s32.totalorder %s27, 0
      %p122 = por %p120, %p121
      %s124 = sadd.s32 %s123, 1
      %p127 = scmp.eq.s32.totalorder %s21, 1
      %p128 = scmp.ne.s32.totalorder %s123, %s125
      %p129 = scmp.eq.s32.totalorder %s21, 0
      %p130 = por %p128, %p129
      %p131 = scmp.ne.s32.totalorder %s123, %s125
      %p132 = scmp.eq.s32.totalorder %s26, 1
      %p133 = por %p131, %p132
      %p134 = scmp.ne.s32.totalorder %s125, %s126
      %p135 = scmp.eq.s32.totalorder %s26, 0
      %p136 = por %p134, %p135
      %p137 = scmp.ne.s32.totalorder %s125, %s126
      %p138 = scmp.eq.s32.totalorder %s27, 1
      %p139 = por %p137, %p138
      %p141 = scmp.ne.s32.totalorder %s126, %s140
      %p142 = scmp.eq.s32.totalorder %s27, 0
      %p143 = por %p141, %p142
      %s145 = sadd.s32 %s144, 1
      %p148 = scmp.eq.s32.totalorder %s21, 1
      %p149 = scmp.ne.s32.totalorder %s144, %s146
      %p150 = scmp.eq.s32.totalorder %s21, 0
      %p151 = por %p149, %p150
      %p152 = scmp.ne.s32.totalorder %s144, %s146
      %p153 = scmp.eq.s32.totalorder %s26, 1
      %p154 = por %p152, %p153
      %p155 = scmp.ne.s32.totalorder %s146, %s147
      %p156 = scmp.eq.s32.totalorder %s26, 0
      %p157 = por %p155, %p156
      %p158 = scmp.ne.s32.totalorder %s146, %s147
      %p159 = scmp.eq.s32.totalorder %s27, 1
      %p160 = por %p158, %p159
      %p162 = scmp.ne.s32.totalorder %s147, %s161
      %p163 = scmp.eq.s32.totalorder %s27, 0
      %p164 = por %p162, %p163
      %s166 = sadd.s32 %s165, 1
      %p169 = scmp.eq.s32.totalorder %s21, 1
      %p170 = scmp.ne.s32.totalorder %s165, %s167
      %p171 = scmp.eq.s32.totalorder %s21, 0
      %p172 = por %p170, %p171
      %p173 = scmp.ne.s32.totalorder %s165, %s167
      %p174 = scmp.eq.s32.totalorder %s26, 1
      %p175 = por %p173, %p174
      %p176 = scmp.ne.s32.totalorder %s167, %s168
      %p177 = scmp.eq.s32.totalorder %s26, 0
      %p178 = por %p176, %p177
      %p179 = scmp.ne.s32.totalorder %s167, %s168
      %p180 = scmp.eq.s32.totalorder %s27, 1
      %p181 = por %p179, %p180
      %p183 = scmp.ne.s32.totalorder %s168, %s182
      %p184 = scmp.eq.s32.totalorder %s27, 0
      %p185 = por %p183, %p184
      %s186 = ssub.s32 %s21, %s28
      %p187 = scmp.eq.s32.totalorder %s186, 0
      %s189 = sadd.s32 %s188, 1
      %s190 = scalar_select %p187, %s188, %s189
      %p193 = pneg %p187
      %p194 = scmp.eq.s32.totalorder %s21, 1
      %p195 = por %p193, %p194
      %p196 = scmp.ne.s32.totalorder %s188, %s191
      %p197 = scmp.eq.s32.totalorder %s21, 0
      %p198 = por %p196, %p197
      %p199 = scmp.ne.s32.totalorder %s188, %s191
      %p200 = scmp.eq.s32.totalorder %s26, 1
      %p201 = por %p199, %p200
      %p202 = scmp.ne.s32.totalorder %s191, %s192
      %p203 = scmp.eq.s32.totalorder %s26, 0
      %p204 = por %p202, %p203
      %p205 = scmp.ne.s32.totalorder %s191, %s192
      %p206 = scmp.eq.s32.totalorder %s27, 1
      %p207 = por %p205, %p206
      %p209 = scmp.ne.s32.totalorder %s192, %s208
      %p210 = scmp.eq.s32.totalorder %s27, 0
      %p211 = por %p209, %p210
      %p212 = scmp.le.s32.totalorder 1, %s21
      %p213 = scmp.lt.s32.totalorder %s21, 3
      %p214 = pnand %p212, %p213
      %p215 = pneg %p214
      // Predicated region
      $region9: #{tpu_custom_call.1} parent=5 // pred_check
        _
      $region10: #{tpu_custom_call.1} parent=5 // pred_check_branch
        %217 = sbr.rel (%p214) target = $region12
      $region11: #{tpu_custom_call.1} parent=5 // pred_region
        %s218 = ssub.s32 %s21, 1
        // Predicated region
        $region13: #{tpu_custom_call.1} parent=11 // pred_check
          %p219 = pneg %p94
        $region14: #{tpu_custom_call.1} parent=11 // pred_check_branch
          %221 = sbr.rel (%p219) target = $region16
        $region15: #{tpu_custom_call.1} parent=11 // pred_region
          %s223 = ssub.s32 128, 128
          %224 = vsyncadd [#allocation6], %s223
          %s225 = sshll.u32 [#allocation5], 4
          %s226 = int_to_ptr.vmem [resolvable:$true] %s225
          %231 = dma.hbm_to_vmem [thread:$0]  %s2, 128, %s226, [#allocation6], 64, 64, 4
        $region16: #{tpu_custom_call.1} parent=11 // pred_fallthru
          _
        // Predicated region
        $region17: #{tpu_custom_call.1} parent=11 // pred_check
          %p232 = pneg %p115
        $region18: #{tpu_custom_call.1} parent=11 // pred_check_branch
          %234 = sbr.rel (%p232) target = $region20
        $region19: #{tpu_custom_call.1} parent=11 // pred_region
          %s236 = ssub.s32 256, 256
          %237 = vsyncadd [#allocation6], %s236
          %s238 = sshll.u32 [#allocation7], 4
          %s239 = int_to_ptr.vmem [resolvable:$true] %s238
          %244 = dma.hbm_to_vmem [thread:$0]  %s3, 256, %s239, [#allocation6], 64, 64, 4
        $region20: #{tpu_custom_call.1} parent=11 // pred_fallthru
          _
        // Predicated region
        $region21: #{tpu_custom_call.1} parent=11 // pred_check
          %p245 = pneg %p136
        $region22: #{tpu_custom_call.1} parent=11 // pred_check_branch
          %247 = sbr.rel (%p245) target = $region24
        $region23: #{tpu_custom_call.1} parent=11 // pred_region
          _
        $region24: #{tpu_custom_call.1} parent=11 // pred_fallthru
          _
        // Predicated region
        $region25: #{tpu_custom_call.1} parent=11 // pred_check
          %p248 = pneg %p157
        $region26: #{tpu_custom_call.1} parent=11 // pred_check_branch
          %250 = sbr.rel (%p248) target = $region28
        $region27: #{tpu_custom_call.1} parent=11 // pred_region
          %s252 = ssub.s32 512, 512
          %253 = vsyncadd [#allocation9], %s252
          %s254 = sshll.u32 [#allocation8], 4
          %s255 = int_to_ptr.vmem [resolvable:$true] %s254
          %260 = dma.hbm_to_vmem [thread:$0]  %s5, 512, %s255, [#allocation9], 128, 128, 8
        $region28: #{tpu_custom_call.1} parent=11 // pred_fallthru
          _
        // Predicated region
        $region29: #{tpu_custom_call.1} parent=11 // pred_check
          %p261 = pneg %p178
        $region30: #{tpu_custom_call.1} parent=11 // pred_check_branch
          %263 = sbr.rel (%p261) target = $region32
        $region31: #{tpu_custom_call.1} parent=11 // pred_region
          _
        $region32: #{tpu_custom_call.1} parent=11 // pred_fallthru
          _
      $region12: #{tpu_custom_call.1} parent=5 // pred_fallthru
        _
      %p264 = scmp.lt.s32.totalorder %s21, 2
      // Predicated region
      $region33: #{tpu_custom_call.1} parent=5 // pred_check
        %p265 = pneg %p264
      $region34: #{tpu_custom_call.1} parent=5 // pred_check_branch
        %267 = sbr.rel (%p265) target = $region36
      $region35: #{tpu_custom_call.1} parent=5 // pred_region
        // Predicated region
        $region37: #{tpu_custom_call.1} parent=35 // pred_check
          %p268 = pneg %p41
        $region38: #{tpu_custom_call.1} parent=35 // pred_check_branch
          %270 = sbr.rel (%p268) target = $region40
        $region39: #{tpu_custom_call.1} parent=35 // pred_region
          %s271 = sand.u32 %s31, 1
          %s272 = scalar_lea.sflag [#allocation3], %s271
          %s273 = sand.u32 %s31, 1
          %s274 = smul.addr %s273, 4
          %s275 = scalar_lea.vmem [#allocation2], %s274
          %s277 = ssub.s32 64, 64
          %278 = vsyncadd %s272, %s277
          %s279 = smul.addr %s21, 64
          %s280 = scalar_lea.hbm %s0, %s279
          %s282 = sshll.u32 %s275, 4
          %s283 = int_to_ptr.vmem [resolvable:$true] %s282
          %285 = dma.hbm_to_vmem [thread:$0]  %s280, 64, %s283, %s272
        $region40: #{tpu_custom_call.1} parent=35 // pred_fallthru
          _
        // Predicated region
        $region41: #{tpu_custom_call.1} parent=35 // pred_check
          %p286 = pneg %p67
        $region42: #{tpu_custom_call.1} parent=35 // pred_check_branch
          %288 = sbr.rel (%p286) target = $region44
        $region43: #{tpu_custom_call.1} parent=35 // pred_region
          %p289 = scmp.lt.s32.totalorder %s21, 1
          %s290 = scalar_select %p289, %s21, 1
          %s291 = scalar_lea.vmem %s1, %s290
        $region44: #{tpu_custom_call.1} parent=35 // pred_fallthru
          _
      $region36: #{tpu_custom_call.1} parent=5 // pred_fallthru
        _
      %p292 = scmp.le.s32.totalorder 1, %s21
      %p293 = scmp.lt.s32.totalorder %s21, 3
      %p294 = pnand %p292, %p293
      %p295 = pneg %p294
      // Predicated region
      $region45: #{tpu_custom_call.1} parent=5 // pred_check
        _
      $region46: #{tpu_custom_call.1} parent=5 // pred_check_branch
        %297 = sbr.rel (%p294) target = $region48
      $region47: #{tpu_custom_call.1} parent=5 // pred_region
        %s298 = ssub.s32 %s21, 1
        %s299 = sand.u32 %s34, 1
        %s300 = scalar_lea.sflag [#allocation3], %s299
        %s301 = sand.u32 %s34, 1
        %s302 = smul.addr %s301, 4
        %s303 = scalar_lea.vmem [#allocation2], %s302
        // Predicated region
        $region49: #{tpu_custom_call.1} parent=47 // pred_check
          %p304 = pneg %p47
        $region50: #{tpu_custom_call.1} parent=47 // pred_check_branch
          %306 = sbr.rel (%p304) target = $region52
        $region51: #{tpu_custom_call.1} parent=47 // pred_region
          %307 = dma.done %s300, 64
        $region52: #{tpu_custom_call.1} parent=47 // pred_fallthru
          _
        // Predicated region
        $region53: #{tpu_custom_call.1} parent=47 // pred_check
          %p308 = pneg %p94
        $region54: #{tpu_custom_call.1} parent=47 // pred_check_branch
          %310 = sbr.rel (%p308) target = $region56
        $region55: #{tpu_custom_call.1} parent=47 // pred_region
          %311 = dma.done [#allocation6], 128
        $region56: #{tpu_custom_call.1} parent=47 // pred_fallthru
          _
        // Predicated region
        $region57: #{tpu_custom_call.1} parent=47 // pred_check
          %p312 = pneg %p115
        $region58: #{tpu_custom_call.1} parent=47 // pred_check_branch
          %314 = sbr.rel (%p312) target = $region60
        $region59: #{tpu_custom_call.1} parent=47 // pred_region
          %315 = dma.done [#allocation6], 256
        $region60: #{tpu_custom_call.1} parent=47 // pred_fallthru
          _
        // Predicated region
        $region61: #{tpu_custom_call.1} parent=47 // pred_check
          %p316 = pneg %p157
        $region62: #{tpu_custom_call.1} parent=47 // pred_check_branch
          %318 = sbr.rel (%p316) target = $region64
        $region63: #{tpu_custom_call.1} parent=47 // pred_region
          %319 = dma.done [#allocation9], 512
        $region64: #{tpu_custom_call.1} parent=47 // pred_fallthru
          _
        %s320 = sand.u32 %s34, 1
        %s321 = scalar_lea.sflag [#allocation3], %s320
        %s322 = sand.u32 %s34, 1
        %s323 = smul.addr %s322, 4
        %s324 = scalar_lea.vmem [#allocation2], %s323
        %p325 = pneg %p47
        %p326 = pneg %p44
        %p327 = scmp.lt.s32.totalorder %s26, 1
        %s328 = scalar_select %p327, %s26, 1
        %s329 = scalar_lea.vmem %s1, %s328
        %p330 = pneg %p73
        %p331 = pneg %p70
        %p332 = pneg %p94
        %p333 = pneg %p91
        %p334 = pneg %p115
        %p335 = pneg %p112
        %p336 = pneg %p136
        %p337 = pneg %p133
        %p338 = pneg %p157
        %p339 = pneg %p154
        %p340 = pneg %p178
        %p341 = pneg %p175
        %p342 = pneg %p204
        %p343 = pneg %p201
        %s344 = sand.u32 %s191, 1
        %s345 = scalar_lea.sflag [#allocation4], %s344
        %s346 = sand.u32 %s191, 1
        %s347 = scalar_lea.vmem [#allocation10], %s346
        %p348 = scmp.lt.s32.totalorder %s26, 1
        %s349 = scalar_select %p348, %s26, 1
        %s350 = scalar_lea.vmem %s1, %s349
        %v352 = vld [vmem:[%s6] sm:$0x3]
        %v353 = vld [vmem:[%s303] sm:$0xf]
        %v354 = vld [vmem:[#allocation5] sm:$0xf]
        %v355 = vld [vmem:[#allocation5 + $0x4] sm:$0xf]
        %v357 = vlaneseq
        %v358 = vshrl.u32 %v357, 7
        %v359 = vsub.s32 0, %v358
        %v360 = vrot.slane %v352, %v359
        %v364 = vunpack.c.l.b16 %v354
        %v365 = vunpack.c.l.b16 %v355
        %v366 = vpack.c.b16 %v365, %v364
        %vm368 = vcmask 130048
        %v370 = vsel %vm368, %v353, 0
        %372 = vmatprep.subr.bf16.mxu0 0
        %373 = vmatpush1.bf16.msra.mxu0 %v366
        %374 = vmatprep.subr.bf16.mxu0 0
        %375 = vmatpush1.bf16.msra.mxu0 0
        %376 = vmatprep.subr.bf16.mxu0 0
        %377 = vmatpush1.bf16.msra.mxu0 0
        %378 = vmatprep.subr.bf16.mxu0 0
        %379 = vmatpush1.bf16.msra.mxu0 0
        %380 = vmatprep.subr.bf16.mxu0 0
        %381 = vmatpush1.bf16.msra.mxu0 0
        %382 = vmatprep.subr.bf16.mxu0 0
        %383 = vmatpush1.bf16.msra.mxu0 0
        %384 = vmatprep.subr.bf16.mxu0 0
        %385 = vmatpush1.bf16.msra.mxu0 0
        %386 = vmatprep.subr.bf16.mxu0 0
        %387 = vmatpush1.bf16.msra.mxu0 0
        %388 = vmatprep.subr.bf16.mxu0 0
        %389 = vmatpush1.bf16.msra.mxu0 0
        %390 = vmatprep.subr.bf16.mxu0 0
        %391 = vmatpush1.bf16.msra.mxu0 0
        %392 = vmatprep.subr.bf16.mxu0 0
        %393 = vmatpush1.bf16.msra.mxu0 0
        %394 = vmatprep.subr.bf16.mxu0 0
        %395 = vmatpush1.bf16.msra.mxu0 0
        %396 = vmatprep.subr.bf16.mxu0 0
        %397 = vmatpush1.bf16.msra.mxu0 0
        %398 = vmatprep.subr.bf16.mxu0 0
        %399 = vmatpush1.bf16.msra.mxu0 0
        %400 = vmatprep.subr.bf16.mxu0 0
        %401 = vmatpush1.bf16.msra.mxu0 0
        %402 = vmatprep.subr.bf16.mxu0 0
        %403 = vmatpush1.bf16.msra.mxu0 0
        %404 = vmatprep.mubr.bf16.mxu0 0
        %405 = vmatmul.mubr.bf16.gmra.mrb[0].mxu0 %v370
        %v406 = vpop.f32.mrb[0].mxu0
        %v407 = vadd.f32 %v360, %v406
        %v408 = vpop.f32.mrb[0].mxu0
        %v409 = vpop.f32.mrb[0].mxu0
        %v410 = vpop.f32.mrb[0].mxu0
        %411 = vdwg.mxu0
        %v412 = vmax.f32 %v407, 0.0
        %vm413 = vcmask 261120
        %v414 = vsel %vm413, %v412, 0.0
        %v415 = vrot.slane %v414, 4
        %v416 = vadd.f32 %v414, %v415
        %v417 = vrot.slane %v416, 2
        %v418 = vadd.f32 %v416, %v417
        %v419 = vrot.slane %v418, 1
        %v420 = vadd.f32 %v418, %v419
        %v421 = vmul.f32 %v420, 0.125
        %v422 = vpack.c.bf16 %v421, %v421
        %v423 = vld [vmem:[#allocation7] sm:$0xf]
        %v424 = vld [vmem:[#allocation7 + $0x4] sm:$0xf]
        %v425 = vld [vmem:[#allocation7 + $0x8] sm:$0xf]
        %v426 = vld [vmem:[#allocation7 + $0xc] sm:$0xf]
        %v431 = vunpack.c.l.b16 %v423
        %v432 = vunpack.c.l.b16 %v424
        %v433 = vunpack.c.l.b16 %v425
        %v434 = vunpack.c.l.b16 %v426
        %v435 = vpack.c.b16 %v432, %v431
        %v436 = vpack.c.b16 %v434, %v433
        %439 = vrot.lane.b32.xlu0 %v360, 96
        %v440 = vpop.permute.xlu0 %439
        %v443 = vsel %vm413, %v422, 0
        %445 = vmatprep.subr.bf16.mxu0 0
        %446 = vmatpush1.bf16.msra.mxu0 %v435
        %447 = vmatprep.subr.bf16.mxu0 0
        %448 = vmatpush1.bf16.msra.mxu0 %v436
        %449 = vmatprep.subr.bf16.mxu0 0
        %450 = vmatpush1.bf16.msra.mxu0 0
        %451 = vmatprep.subr.bf16.mxu0 0
        %452 = vmatpush1.bf16.msra.mxu0 0
        %453 = vmatprep.subr.bf16.mxu0 0
        %454 = vmatpush1.bf16.msra.mxu0 0
        %455 = vmatprep.subr.bf16.mxu0 0
        %456 = vmatpush1.bf16.msra.mxu0 0
        %457 = vmatprep.subr.bf16.mxu0 0
        %458 = vmatpush1.bf16.msra.mxu0 0
        %459 = vmatprep.subr.bf16.mxu0 0
        %460 = vmatpush1.bf16.msra.mxu0 0
        %461 = vmatprep.subr.bf16.mxu0 0
        %462 = vmatpush1.bf16.msra.mxu0 0
        %463 = vmatprep.subr.bf16.mxu0 0
        %464 = vmatpush1.bf16.msra.mxu0 0
        %465 = vmatprep.subr.bf16.mxu0 0
        %466 = vmatpush1.bf16.msra.mxu0 0
        %467 = vmatprep.subr.bf16.mxu0 0
        %468 = vmatpush1.bf16.msra.mxu0 0
        %469 = vmatprep.subr.bf16.mxu0 0
        %470 = vmatpush1.bf16.msra.mxu0 0
        %471 = vmatprep.subr.bf16.mxu0 0
        %472 = vmatpush1.bf16.msra.mxu0 0
        %473 = vmatprep.subr.bf16.mxu0 0
        %474 = vmatpush1.bf16.msra.mxu0 0
        %475 = vmatprep.subr.bf16.mxu0 0
        %476 = vmatpush1.bf16.msra.mxu0 0
        %477 = vmatprep.mubr.bf16.mxu0 0
        %478 = vmatmul.mubr.bf16.gmra.mrb[0].mxu0 %v443
        %v479 = vpop.f32.mrb[0].mxu0
        %v480 = vadd.f32 %v440, %v479
        %v481 = vpop.f32.mrb[0].mxu0
        %v482 = vpop.f32.mrb[0].mxu0
        %v483 = vpop.f32.mrb[0].mxu0
        %484 = vdwg.mxu0
        %v485 = vld [vmem:[%s350] sm:$0x1]
        %v486 = vmul.f32 %v480, 0.5
        %v487 = vmul.f32 %v486, 1.442695
        %v488 = vpow.pop %v487
        %v491 = vunpack.c.l.s4 1966171168
        %v492 = vunpack.c.0.s8 %v491
        %v493 = vlaneseq
        %v494 = vshrl.u32 %v493, 7
        %v495 = vsub.s32 %v492, %v494
        %v496 = vrot.slane %v488, %v495
        %v498 = vunpack.c.l.s4 1966171168
        %v499 = vunpack.c.0.s8 %v498
        %v500 = vlaneseq
        %v501 = vshrl.u32 %v500, 7
        %v502 = vsub.s32 %v499, %v501
        %v503 = vrot.slane %v496, %v502
        %504 = vrot.lane.b32.xlu0 %v503, 112
        %v505 = vpop.permute.xlu0 %504
        %v507 = vmul.f32 %v485, %v505
        %v508 = vadd.f32 %v480, %v507
        %v509 = vsel %vm368, %v508, %v485
        %v510 = vpack.c.bf16 %v509, %v509
        %v511 = vld [vmem:[%s4] sm:$0xf]
        %v512 = vld [vmem:[%s4 + $0x4] sm:$0xf]
        %v513 = vld [vmem:[%s4 + $0x8] sm:$0xf]
        %v517 = vunpack.c.l.b16 %v511
        %v518 = vunpack.c.l.b16 %v512
        %v519 = vunpack.c.l.b16 %v513
        %v520 = vpack.c.b16 %v518, %v517
        %v521 = vpack.c.b16 %v519, %v519
        %523 = vrot.lane.b32.xlu0 %v360, 64
        %v524 = vpop.permute.xlu0 %523
        %vm526 = vcmask 195584
        %v528 = vsel %vm526, %v510, 0
        %vm530 = vcmask 1043456
        %v532 = vsel %vm530, %v521, 0
        %534 = vmatprep.subr.bf16.mxu0 0
        %535 = vmatpush1.bf16.msra.mxu0 %v520
        %536 = vmatprep.subr.bf16.mxu0 0
        %537 = vmatpush1.bf16.msra.mxu0 %v532
        %538 = vmatprep.subr.bf16.mxu0 0
        %539 = vmatpush1.bf16.msra.mxu0 0
        %540 = vmatprep.subr.bf16.mxu0 0
        %541 = vmatpush1.bf16.msra.mxu0 0
        %542 = vmatprep.subr.bf16.mxu0 0
        %543 = vmatpush1.bf16.msra.mxu0 0
        %544 = vmatprep.subr.bf16.mxu0 0
        %545 = vmatpush1.bf16.msra.mxu0 0
        %546 = vmatprep.subr.bf16.mxu0 0
        %547 = vmatpush1.bf16.msra.mxu0 0
        %548 = vmatprep.subr.bf16.mxu0 0
        %549 = vmatpush1.bf16.msra.mxu0 0
        %550 = vmatprep.subr.bf16.mxu0 0
        %551 = vmatpush1.bf16.msra.mxu0 0
        %552 = vmatprep.subr.bf16.mxu0 0
        %553 = vmatpush1.bf16.msra.mxu0 0
        %554 = vmatprep.subr.bf16.mxu0 0
        %555 = vmatpush1.bf16.msra.mxu0 0
        %556 = vmatprep.subr.bf16.mxu0 0
        %557 = vmatpush1.bf16.msra.mxu0 0
        %558 = vmatprep.subr.bf16.mxu0 0
        %559 = vmatpush1.bf16.msra.mxu0 0
        %560 = vmatprep.subr.bf16.mxu0 0
        %561 = vmatpush1.bf16.msra.mxu0 0
        %562 = vmatprep.subr.bf16.mxu0 0
        %563 = vmatpush1.bf16.msra.mxu0 0
        %564 = vmatprep.subr.bf16.mxu0 0
        %565 = vmatpush1.bf16.msra.mxu0 0
        %566 = vmatprep.mubr.bf16.mxu0 0
        %567 = vmatmul.mubr.bf16.gmra.mrb[0].mxu0 %v528
        %v568 = vpop.f32.mrb[0].mxu0
        %v569 = vadd.f32 %v524, %v568
        %v570 = vpop.f32.mrb[0].mxu0
        %v571 = vpop.f32.mrb[0].mxu0
        %v572 = vpop.f32.mrb[0].mxu0
        %573 = vdwg.mxu0
        %v574 = vmax.f32 %v569, 0.0
        %v575 = vpack.c.bf16 %v574, %v574
        %v576 = vld [vmem:[#allocation8] sm:$0xff]
        %v577 = vld [vmem:[#allocation8 + $0x8] sm:$0xff]
        %v578 = vld [vmem:[#allocation8 + $0x10] sm:$0xff]
        %v579 = vld [vmem:[#allocation8 + $0x18] sm:$0xff]
        %v584 = vunpack.c.l.b16 %v576
        %v585 = vunpack.c.h.b16 %v576
        %v586 = vunpack.c.l.b16 %v577
        %v587 = vunpack.c.h.b16 %v577
        %v588 = vunpack.c.l.b16 %v578
        %v589 = vunpack.c.h.b16 %v578
        %v590 = vunpack.c.l.b16 %v579
        %v591 = vunpack.c.h.b16 %v579
        %v592 = vpack.c.b16 %v586, %v584
        %v593 = vpack.c.b16 %v587, %v585
        %v594 = vpack.c.b16 %v590, %v588
        %v595 = vpack.c.b16 %v591, %v589
        %v600 = vlaneseq
        %v601 = vshrl.u32 %v600, 7
        %v602 = vsub.s32 1, %v601
        %v603 = vrot.slane %v352, %v602
        %604 = vrot.lane.b32.xlu0 %v360, 32
        %v605 = vpop.permute.xlu0 %604
        %606 = vrot.lane.b32.xlu0 %v603, 32
        %v607 = vpop.permute.xlu0 %606
        %v608 = vsel %vm413, %v605, %v607
        %v612 = vsel %vm413, %v575, 0
        %614 = vmatprep.subr.bf16.mxu0 %v593
        %615 = vmatpush1.bf16.msra.mxu0 %v592
        %616 = vmatprep.subr.bf16.mxu0 %v595
        %617 = vmatpush1.bf16.msra.mxu0 %v594
        %618 = vmatprep.subr.bf16.mxu0 0
        %619 = vmatpush1.bf16.msra.mxu0 0
        %620 = vmatprep.subr.bf16.mxu0 0
        %621 = vmatpush1.bf16.msra.mxu0 0
        %622 = vmatprep.subr.bf16.mxu0 0
        %623 = vmatpush1.bf16.msra.mxu0 0
        %624 = vmatprep.subr.bf16.mxu0 0
        %625 = vmatpush1.bf16.msra.mxu0 0
        %626 = vmatprep.subr.bf16.mxu0 0
        %627 = vmatpush1.bf16.msra.mxu0 0
        %628 = vmatprep.subr.bf16.mxu0 0
        %629 = vmatpush1.bf16.msra.mxu0 0
        %630 = vmatprep.subr.bf16.mxu0 0
        %631 = vmatpush1.bf16.msra.mxu0 0
        %632 = vmatprep.subr.bf16.mxu0 0
        %633 = vmatpush1.bf16.msra.mxu0 0
        %634 = vmatprep.subr.bf16.mxu0 0
        %635 = vmatpush1.bf16.msra.mxu0 0
        %636 = vmatprep.subr.bf16.mxu0 0
        %637 = vmatpush1.bf16.msra.mxu0 0
        %638 = vmatprep.subr.bf16.mxu0 0
        %639 = vmatpush1.bf16.msra.mxu0 0
        %640 = vmatprep.subr.bf16.mxu0 0
        %641 = vmatpush1.bf16.msra.mxu0 0
        %642 = vmatprep.subr.bf16.mxu0 0
        %643 = vmatpush1.bf16.msra.mxu0 0
        %644 = vmatprep.subr.bf16.mxu0 0
        %645 = vmatpush1.bf16.msra.mxu0 0
        %646 = vmatprep.mubr.bf16.mxu0 0
        %647 = vmatmul.mubr.bf16.gmra.mrb[0].mxu0 %v612
        %v648 = vpop.f32.mrb[0].mxu0
        %v649 = vadd.f32 %v608, %v648
        %v650 = vpop.f32.mrb[0].mxu0
        %v651 = vadd.f32 %v607, %v650
        %v652 = vpop.f32.mrb[0].mxu0
        %v653 = vpop.f32.mrb[0].mxu0
        %654 = vdwg.mxu0
        %656 = vrot.lane.b32.xlu0 %v649, 112
        %v657 = vpop.permute.xlu0 %656
        %659 = vrot.lane.b32.xlu0 %v649, 96
        %v660 = vpop.permute.xlu0 %659
        %662 = vrot.lane.b32.xlu0 %v649, 80
        %v663 = vpop.permute.xlu0 %662
        %665 = vrot.lane.b32.xlu0 %v649, 64
        %v666 = vpop.permute.xlu0 %665
        %668 = vrot.lane.b32.xlu0 %v649, 48
        %v669 = vpop.permute.xlu0 %668
        %671 = vrot.lane.b32.xlu0 %v649, 32
        %v672 = vpop.permute.xlu0 %671
        %674 = vrot.lane.b32.xlu0 %v649, 16
        %v675 = vpop.permute.xlu0 %674
        %v677 = vcombine.low %v649, %v660
        %v679 = vunpack.c.l.s4 1983009808
        %v680 = vunpack.c.0.s8 %v679
        %v681 = vlaneseq
        %v682 = vshrl.u32 %v681, 7
        %v683 = vsub.s32 %v680, %v682
        %v684 = vrot.slane %v677, %v683
        %v685 = vcombine.low %v657, %v663
        %v687 = vunpack.c.l.s4 1983009808
        %v688 = vunpack.c.0.s8 %v687
        %v689 = vlaneseq
        %v690 = vshrl.u32 %v689, 7
        %v691 = vsub.s32 %v688, %v690
        %v692 = vrot.slane %v685, %v691
        %v693 = vcombine.low %v666, %v672
        %v695 = vunpack.c.l.s4 1983009808
        %v696 = vunpack.c.0.s8 %v695
        %v697 = vlaneseq
        %v698 = vshrl.u32 %v697, 7
        %v699 = vsub.s32 %v696, %v698
        %v700 = vrot.slane %v693, %v699
        %v701 = vcombine.low %v669, %v675
        %v703 = vunpack.c.l.s4 1983009808
        %v704 = vunpack.c.0.s8 %v703
        %v705 = vlaneseq
        %v706 = vshrl.u32 %v705, 7
        %v707 = vsub.s32 %v704, %v706
        %v708 = vrot.slane %v701, %v707
        %v709 = vcombine.low %v684, %v692
        %v711 = vunpack.c.l.s4 1934713408
        %v712 = vunpack.c.0.s8 %v711
        %v713 = vlaneseq
        %v714 = vshrl.u32 %v713, 7
        %v715 = vsub.s32 %v712, %v714
        %v716 = vrot.slane %v709, %v715
        %v717 = vcombine.low %v700, %v708
        %v719 = vunpack.c.l.s4 1934713408
        %v720 = vunpack.c.0.s8 %v719
        %v721 = vlaneseq
        %v722 = vshrl.u32 %v721, 7
        %v723 = vsub.s32 %v720, %v722
        %v724 = vrot.slane %v717, %v723
        %v725 = vcombine.low %v716, %v724
        %v726 = vpack.c.bf16 %v725, %v725
        %v728 = vsel %vm368, %v726, 0
        %730 = vmatprep.subr.bf16.mxu0 0
        %731 = vmatpush1.bf16.xpose.msra.mxu0 %v728
        %732 = vmatprep.subr.bf16.mxu0 0
        %733 = vmatpush1.bf16.xpose.msra.mxu0 0
        %734 = vmatprep.subr.bf16.mxu0 0
        %735 = vmatpush1.bf16.xpose.msra.mxu0 0
        %736 = vmatprep.subr.bf16.mxu0 0
        %737 = vmatpush1.bf16.xpose.msra.mxu0 0
        %738 = vmatprep.subr.bf16.mxu0 0
        %739 = vmatpush1.bf16.xpose.msra.mxu0 0
        %740 = vmatprep.subr.bf16.mxu0 0
        %741 = vmatpush1.bf16.xpose.msra.mxu0 0
        %742 = vmatprep.subr.bf16.mxu0 0
        %743 = vmatpush1.bf16.xpose.msra.mxu0 0
        %744 = vmatprep.subr.bf16.mxu0 0
        %745 = vmatpush1.bf16.xpose.msra.mxu0 0
        %746 = vmatprep.subr.bf16.mxu0 0
        %747 = vmatpush1.bf16.xpose.msra.mxu0 0
        %748 = vmatprep.subr.bf16.mxu0 0
        %749 = vmatpush1.bf16.xpose.msra.mxu0 0
        %750 = vmatprep.subr.bf16.mxu0 0
        %751 = vmatpush1.bf16.xpose.msra.mxu0 0
        %752 = vmatprep.subr.bf16.mxu0 0
        %753 = vmatpush1.bf16.xpose.msra.mxu0 0
        %754 = vmatprep.subr.bf16.mxu0 0
        %755 = vmatpush1.bf16.xpose.msra.mxu0 0
        %756 = vmatprep.subr.bf16.mxu0 0
        %757 = vmatpush1.bf16.xpose.msra.mxu0 0
        %758 = vmatprep.subr.bf16.mxu0 0
        %759 = vmatpush1.bf16.xpose.msra.mxu0 0
        %760 = vmatprep.subr.bf16.mxu0 0
        %761 = vmatpush1.bf16.xpose.msra.mxu0 0
        %762 = vmatprep.mubr.bf16.mxu0 0
        %763 = vmatmul.mubr.bf16.gmra.mrb[0].mxu0 %v728
        %v764 = vpop.f32.mrb[0].mxu0
        %v765 = vadd.f32 0.0, %v764
        %v766 = vpop.f32.mrb[0].mxu0
        %v767 = vpop.f32.mrb[0].mxu0
        %v768 = vpop.f32.mrb[0].mxu0
        %769 = vdwg.mxu0
        %v770 = vcombine.high %v765, 0.0
        %v772 = vunpack.c.l.s4 1983009808
        %v773 = vunpack.c.0.s8 %v772
        %v774 = vlaneseq
        %v775 = vshrl.u32 %v774, 7
        %v776 = vsub.s32 %v773, %v775
        %v777 = vrot.slane %v765, %v776
        %v779 = vunpack.c.l.s4 1983009808
        %v780 = vunpack.c.0.s8 %v779
        %v781 = vlaneseq
        %v782 = vshrl.u32 %v781, 7
        %v783 = vsub.s32 %v780, %v782
        %v784 = vrot.slane %v770, %v783
        %v785 = vcombine.high %v777, 0.0
        %v787 = vunpack.c.l.s4 1934713408
        %v788 = vunpack.c.0.s8 %v787
        %v789 = vlaneseq
        %v790 = vshrl.u32 %v789, 7
        %v791 = vsub.s32 %v788, %v790
        %v792 = vrot.slane %v777, %v791
        %v794 = vunpack.c.l.s4 1934713408
        %v795 = vunpack.c.0.s8 %v794
        %v796 = vlaneseq
        %v797 = vshrl.u32 %v796, 7
        %v798 = vsub.s32 %v795, %v797
        %v799 = vrot.slane %v785, %v798
        %v800 = vcombine.high %v784, 0.0
        %v802 = vunpack.c.l.s4 1934713408
        %v803 = vunpack.c.0.s8 %v802
        %v804 = vlaneseq
        %v805 = vshrl.u32 %v804, 7
        %v806 = vsub.s32 %v803, %v805
        %v807 = vrot.slane %v784, %v806
        %v809 = vunpack.c.l.s4 1934713408
        %v810 = vunpack.c.0.s8 %v809
        %v811 = vlaneseq
        %v812 = vshrl.u32 %v811, 7
        %v813 = vsub.s32 %v810, %v812
        %v814 = vrot.slane %v800, %v813
        %v815 = vcombine.high %v792, 0.0
        %v816 = vcombine.high %v799, 0.0
        %v817 = vcombine.high %v807, 0.0
        %v818 = vcombine.high %v814, 0.0
        %820 = vrot.lane.b32.xlu0 %v815, 8
        %v821 = vpop.permute.xlu0 %820
        %824 = vrot.lane.b32.xlu0 %v799, 16
        %v825 = vpop.permute.xlu0 %824
        %828 = vrot.lane.b32.xlu0 %v816, 24
        %v829 = vpop.permute.xlu0 %828
        %832 = vrot.lane.b32.xlu0 %v807, 32
        %v833 = vpop.permute.xlu0 %832
        %836 = vrot.lane.b32.xlu0 %v817, 40
        %v837 = vpop.permute.xlu0 %836
        %840 = vrot.lane.b32.xlu0 %v814, 48
        %v841 = vpop.permute.xlu0 %840
        %844 = vrot.lane.b32.xlu0 %v818, 56
        %v845 = vpop.permute.xlu0 %844
        %vm847 = vcmask 64512
        %v848 = vsel %vm847, %v792, %v821
        %v849 = vsel %vm368, %v848, %v825
        %v850 = vsel %vm526, %v849, %v829
        %v851 = vsel %vm413, %v850, %v833
        %vm852 = vcmask 326656
        %v853 = vsel %vm852, %v851, %v837
        %vm854 = vcmask 392192
        %v855 = vsel %vm854, %v853, %v841
        %vm856 = vcmask 457728
        %v857 = vsel %vm856, %v855, %v845
        %859 = vrot.lane.b32.xlu0 %v857, 32
        %v860 = vpop.permute.xlu0 %859
        %863 = vrot.lane.b32.xlu0 %v480, 96
        %v864 = vpop.permute.xlu0 %863
        %v866 = vsel %vm413, %v651, %v860
        %vm867 = vcmask 785408
        %v868 = vsel %vm867, %v866, %v864
        %869 = vst [vmem:[%s347] sm:$0x1] %v868
        %s870 = sand.u32 %s191, 1
        %s871 = scalar_lea.sflag [#allocation4], %s870
        %s872 = sand.u32 %s191, 1
        %s873 = scalar_lea.vmem [#allocation10], %s872
        // Predicated region
        $region65: #{tpu_custom_call.1} parent=47 // pred_check
          %p874 = pneg %p201
        $region66: #{tpu_custom_call.1} parent=47 // pred_check_branch
          %876 = sbr.rel (%p874) target = $region68
        $region67: #{tpu_custom_call.1} parent=47 // pred_region
          %s878 = ssub.s32 16, 16
          %879 = vsyncadd %s871, %s878
          %s880 = smul.addr %s26, 16
          %s881 = scalar_lea.hbm %s7, %s880
          %s883 = sshll.u32 %s873, 4
          %s884 = int_to_ptr.vmem [resolvable:$true] %s883
          %886 = dma.vmem_to_hbm [thread:$0]  %s884, 16, %s881, %s871
        $region68: #{tpu_custom_call.1} parent=47 // pred_fallthru
          _
      $region48: #{tpu_custom_call.1} parent=5 // pred_fallthru
        _
      %p887 = scmp.le.s32.totalorder 2, %s21
      // Predicated region
      $region69: #{tpu_custom_call.1} parent=5 // pred_check
        %p888 = pneg %p887
      $region70: #{tpu_custom_call.1} parent=5 // pred_check_branch
        %890 = sbr.rel (%p888) target = $region72
      $region71: #{tpu_custom_call.1} parent=5 // pred_region
        %s891 = ssub.s32 %s21, 2
        // Predicated region
        $region73: #{tpu_custom_call.1} parent=71 // pred_check
          %p892 = pneg %p207
        $region74: #{tpu_custom_call.1} parent=71 // pred_check_branch
          %894 = sbr.rel (%p892) target = $region76
        $region75: #{tpu_custom_call.1} parent=71 // pred_region
          %s895 = sand.u32 %s192, 1
          %s896 = scalar_lea.sflag [#allocation4], %s895
          %s897 = sand.u32 %s192, 1
          %s898 = scalar_lea.vmem [#allocation10], %s897
          %899 = dma.done %s896, 16
        $region76: #{tpu_custom_call.1} parent=71 // pred_fallthru
          _
      $region72: #{tpu_custom_call.1} parent=5 // pred_fallthru
        _
    $region6: #{tpu_custom_call.1} parent=1 // loop_footer
      %s25 = sadd.s32 1, %s21
    $region7: #{tpu_custom_call.1} parent=1 // loop_footer_branch
      %20 = sbr.rel target = $region3
    $region8: #{tpu_custom_call.1} parent=1 // loop_exit
      _
    %900 = vsyncpa [#allocation3], 1
    %s901 = scalar_lea.sflag [#allocation3], 1
    %902 = vsyncpa %s901, 1
    %903 = vsyncpa [#allocation6], 1
    %904 = vsyncpa [#allocation9], 1
    %905 = vsyncpa [#allocation4], 1
    %s906 = scalar_lea.sflag [#allocation4], 1
    %907 = vsyncpa %s906, 1

</llo_original>
